<compile_context>
chip_gen: v7x
topology: tpu7x:2x2x1
jax: 0.10.0
libtpu: 0.0.40
codegen_flags: <defaults>
</compile_context>

<pallas_src>
import jax
import jax.numpy as jnp
from jax.experimental import pallas as pl
from jax.experimental.pallas import tpu as pltpu


def _scale_kernel(scale_ref, x_ref, o_ref):
    # scale_ref: SMEM (1,) f32 parameter; x_ref / o_ref: VMEM (tile_r, lane).
    s = scale_ref[0]  # hoisted scalar read (f32)
    o_ref[...] = (x_ref[...].astype(jnp.float32) * s).astype(o_ref.dtype)


def _tile_config():
    """Return (tile_bytes, vmem_limit_bytes) tuned per TPU generation."""
    try:
        kind = jax.devices()[0].device_kind.lower()
    except Exception:  # defensive: unknown backend -> conservative default
        kind = ""
    if "v7" in kind or "7x" in kind:
        # Bigger tiles amortize per-grid-step overhead at 3.2 TB/s HBM.
        # 2 in-buffers + 2 out-buffers of 8 MiB = 32 MiB -> raise scoped VMEM.
        return 8 * 1024 * 1024, 48 * 1024 * 1024
    if "v6" in kind:
        # 4 MiB tile -> 16 MiB double-buffered, within v6e's 32 MiB default.
        return 4 * 1024 * 1024, None
    # v5e (16 MiB default scoped VMEM) and unknown chips: 2 MiB tile,
    # 8 MiB double-buffered in+out footprint.
    return 2 * 1024 * 1024, None


def _scale_2d(x2d: jax.Array, scale_f32: jax.Array) -> jax.Array:
    """Scale a lane-aligned 2D slab (last dim a multiple of 128) with Pallas."""
    rows, lane = x2d.shape
    itemsize = jnp.dtype(x2d.dtype).itemsize
    tile_bytes, vmem_limit = _tile_config()

    if rows <= 8:
        # Single tiny block; block shape equals full array dims (always legal).
        tile_r = rows
    else:
        max_tile_rows = max(8, (tile_bytes // (lane * itemsize)) // 8 * 8)
        # Ensure at least 2 grid steps so both v7x TensorCores get work.
        half_rows = pl.cdiv(pl.cdiv(rows, 2), 8) * 8
        tile_r = min(max_tile_rows, half_rows)

    grid = pl.cdiv(rows, tile_r)  # partial last block handled by Pallas

    return pl.pallas_call(
        _scale_kernel,
        out_shape=jax.ShapeDtypeStruct((rows, lane), x2d.dtype),
        grid=(grid,),
        in_specs=[
            pl.BlockSpec(memory_space=pltpu.SMEM),             # (1,) f32 parameter
            pl.BlockSpec((tile_r, lane), lambda i: (i, 0)),    # lane-dense tile
        ],
        out_specs=pl.BlockSpec((tile_r, lane), lambda i: (i, 0)),
        compiler_params=pltpu.CompilerParams(
            dimension_semantics=("parallel",),
            vmem_limit_bytes=vmem_limit,
        ),
        cost_estimate=pl.CostEstimate(
            flops=rows * lane,
            transcendentals=0,
            bytes_accessed=2 * rows * lane * itemsize,
        ),
    )(scale_f32, x2d)


@jax.jit
def scale_layer(x: jax.Array, scale: jax.Array) -> jax.Array:
    """Forward of ScaleLayer: x * scale (scale is a shape-(1,) f32 parameter)."""
    orig_shape = x.shape
    orig_dtype = x.dtype
    n = x.size

    # Accept shape-(1,) or 0-d scale; compute at f32 like the PyTorch f32 param.
    scale_f32 = jnp.asarray(scale, jnp.float32).reshape(-1)[:1]

    flat = x.reshape(-1)

    # Tiny arrays: not worth a kernel launch.
    if n < 128:
        return (flat.astype(jnp.float32) * scale_f32[0]).astype(orig_dtype).reshape(orig_shape)

    # Aligned prefix (multiple of 128) goes through the kernel with no padding.
    n_main = (n // 128) * 128
    lane = 512 if n_main % 512 == 0 else (256 if n_main % 256 == 0 else 128)

    main = _scale_2d(flat[:n_main].reshape(n_main // lane, lane), scale_f32)
    main = main.reshape(-1)

    if n_main == n:
        return main.reshape(orig_shape)

    # Sub-128-element tail: plain XLA multiply (kept out of the kernel so the
    # kernel path never needs full-array pad / un-pad copies).
    tail = (flat[n_main:].astype(jnp.float32) * scale_f32[0]).astype(orig_dtype)
    return jnp.concatenate([main, tail]).reshape(orig_shape)


if __name__ == "__main__":
    key = jax.random.PRNGKey(0)
    # Small NCHW input consistent with a conv-style pipeline: B=2, C=4, H=W=16.
    x = jax.random.normal(key, (2, 4, 16, 16), dtype=jnp.float32)

    # Deterministic parameter init, matching nn.Parameter(torch.FloatTensor([1])).
    init_value = 1.0
    scale = jnp.array([init_value], dtype=jnp.float32)

    out = scale_layer(x, scale)
    jax.block_until_ready(out)

    # Correctness checks against the trivial reference.
    ref = x * scale
    assert out.shape == x.shape and out.dtype == x.dtype
    assert jnp.allclose(out, ref), "mismatch vs reference (scale=1)"

    scale2 = jnp.array([2.5], dtype=jnp.float32)
    out2 = scale_layer(x, scale2)
    jax.block_until_ready(out2)
    assert jnp.allclose(out2, x * scale2), "mismatch vs reference (scale=2.5)"

    print("KERNEL_OK")
</pallas_src>

<mosaic_0001>
module attributes {stable_mosaic.version = 11 : i64} {
  func.func @_scale_kernel(%arg0: i32, %arg1: memref<1xf32, #tpu.memory_space<smem>>, %arg2: memref<4x512xf32, #tpu.memory_space<vmem>>, %arg3: memref<4x512xf32, #tpu.memory_space<vmem>>) attributes {dimension_semantics = [#tpu.dimension_semantics<parallel>], iteration_bounds = array<i64: 1>, scalar_prefetch = 0 : i64, scratch_operands = 0 : i64, tpu.core_type = #tpu.core_type<tc>, window_params = [{transform_indices = @transform_0, window_bounds = array<i64: 1>}, {transform_indices = @transform_1, window_bounds = array<i64: 4, 512>}, {transform_indices = @transform_2, window_bounds = array<i64: 4, 512>}]} {
    %c0 = arith.constant 0 : index
    %0 = memref.load %arg1[%c0] : memref<1xf32, #tpu.memory_space<smem>>
    %c0_0 = arith.constant 0 : index
    %c0_1 = arith.constant 0 : index
    %1 = vector.load %arg2[%c0_0, %c0_1] : memref<4x512xf32, #tpu.memory_space<vmem>>, vector<4x512xf32>
    %2 = vector.broadcast %0 : f32 to vector<4x512xf32>
    %3 = arith.mulf %1, %2 : vector<4x512xf32>
    %c0_2 = arith.constant 0 : index
    %c0_3 = arith.constant 0 : index
    %4 = vector.load %arg3[%c0_2, %c0_3] : memref<4x512xf32, #tpu.memory_space<vmem>>, vector<4x512xf32>
    tpu.vector_store %arg3[%c0_2, %c0_3], %3 {strides = array<i32>} : memref<4x512xf32, #tpu.memory_space<vmem>>, vector<4x512xf32>,
    return
  }
  func.func @transform_0(%arg0: i32) -> i32 {
    %c0_i32 = arith.constant 0 : i32
    %c0_i32_0 = arith.constant 0 : i32
    return %c0_i32 : i32
  }
  func.func @transform_1(%arg0: i32) -> (i32, i32) {
    %c0_i32 = arith.constant 0 : i32
    %c0_i32_0 = arith.constant 0 : i32
    return %arg0, %c0_i32 : i32, i32
  }
  func.func @transform_2(%arg0: i32) -> (i32, i32) {
    %c0_i32 = arith.constant 0 : i32
    %c0_i32_0 = arith.constant 0 : i32
    return %arg0, %c0_i32 : i32, i32
  }
}

</mosaic_0001>

<llo_original>
// kernel: scale_layer.1
$region0: #{scale_layer.1}
  #allocation0 [shape = 'u32[]', space=smem, size = 0x4, offset = 0x4, fixed_abs, tag = 'smem constant byte address 0x4 - core index']
  #allocation1 [shape = 'u32[144,128]{1,0:T(1,128)}', space=vmem, size = 0x12000, scoped, tag = 'internal scratch']
  #allocation2 [shape = 'f32[1]{0:T(128)S(6)}', space=smem, size = 0x200, scoped, tag = 'scoped memory for scale_layer.1']
  %s0 = inlined_call_operand.<no memory space> [shape: f32[1], index: 0, kind: input, shape index: {}]
  %s1 = inlined_call_operand.vmem [shape: f32[4,512], index: 1, kind: input, shape index: {}]
  %s2 = inlined_call_operand.vmem [shape: f32[4,512], index: 2, kind: output, shape index: {}]
  %s3 = sld [smem:[#allocation0]]
  $region18: #{scale_layer.1} parent=0
    _
  %s5 = ssub.s32 1, %s3
  %s6 = scalar_select 0, %s5, %s3
  %7 = sst [smem:[#allocation2]] %s0
  // Predicated region
  $region2: #{scale_layer.1} parent=0 // pred_check
    _
  $region3: #{scale_layer.1} parent=0 // pred_check_branch
    %9 = sbr.rel (0) target = $region5
  $region4: #{scale_layer.1} parent=0 // pred_region
    _
  $region5: #{scale_layer.1} parent=0 // pred_fallthru
    _
  // Predicated region
  $region6: #{scale_layer.1} parent=0 // pred_check
    _
  $region7: #{scale_layer.1} parent=0 // pred_check_branch
    %11 = sbr.rel (0) target = $region9
  $region8: #{scale_layer.1} parent=0 // pred_region
    _
  $region9: #{scale_layer.1} parent=0 // pred_fallthru
    _
  %s12 = sld [smem:[#allocation2]]
  %v13 = vld [vmem:[%s1] sm:$0xff]
  %v14 = vld [vmem:[%s1 + $0x8] sm:$0xff]
  %v15 = vstv %s12
  %v16 = vmul.f32 %v13, %v15
  %v17 = vmul.f32 %v14, %v15
  %18 = vst [vmem:[%s2] sm:$0xff] %v16
  %19 = vst [vmem:[%s2 + $0x8] sm:$0xff] %v17
  // Predicated region
  $region10: #{scale_layer.1} parent=0 // pred_check
    _
  $region11: #{scale_layer.1} parent=0 // pred_check_branch
    %21 = sbr.rel (0) target = $region13
  $region12: #{scale_layer.1} parent=0 // pred_region
    _
  $region13: #{scale_layer.1} parent=0 // pred_fallthru
    _
  // Predicated region
  $region14: #{scale_layer.1} parent=0 // pred_check
    _
  $region15: #{scale_layer.1} parent=0 // pred_check_branch
    %23 = sbr.rel (0) target = $region17
  $region16: #{scale_layer.1} parent=0 // pred_region
    _
  $region17: #{scale_layer.1} parent=0 // pred_fallthru
    _

</llo_original>
